<compile_context>
chip_gen: v7x
topology: tpu7x:2x2x1
jax: 0.10.0
libtpu: 0.0.40
codegen_flags: <defaults>
</compile_context>

<pallas_src>
import jax
import jax.numpy as jnp
from jax.experimental import pallas as pl
from jax.experimental.pallas import tpu as pltpu

_LANES = 512          # lane-dense last dim, large multiple of 128
_SUBLANES = 8         # sublane alignment
_TARGET_TILE_BYTES = 1 << 20      # ~1 MiB per tile (safe on v5e/v6e/v7x)
_MIN_PALLAS_BYTES = 256 * 1024    # below this, XLA-fused silu is faster


def _silu_kernel(x_ref, o_ref):
    # Elementwise SiLU / Swish: x * sigmoid(x).
    # exp goes to the EUP; sigmoid keeps the math numerically stable.
    # Compute in f32 (safe on v5e which lacks bf16 VPU/EUP; mem-bound anyway).
    x = x_ref[...].astype(jnp.float32)
    y = x * jax.nn.sigmoid(x)
    o_ref[...] = y.astype(o_ref.dtype)


def silu_pallas(x: jax.Array) -> jax.Array:
    """Apply SiLU elementwise via a Pallas TPU kernel. Preserves shape/dtype."""
    orig_shape = x.shape
    total = int(x.size)
    itemsize = jnp.dtype(x.dtype).itemsize

    # Fast path: for tiny tensors the pallas_call fixed overhead dominates.
    if total * itemsize < _MIN_PALLAS_BYTES:
        return jax.nn.silu(x)

    # Flatten to a lane-dense slab, padding the tail so rows % 8 == 0 and the
    # last dim is a wide multiple of 128 (unmasked vector stores).
    chunk = _LANES * _SUBLANES
    padded_total = pl.cdiv(total, chunk) * chunk
    flat = x.reshape(-1)
    if padded_total != total:
        flat = jnp.pad(flat, (0, padded_total - total))
    rows = padded_total // _LANES
    x2d = flat.reshape(rows, _LANES)

    # Tile rows: biggest tile within a ~1 MiB budget, multiple of 8.
    tile_rows = max(
        _SUBLANES,
        (_TARGET_TILE_BYTES // (_LANES * itemsize)) // _SUBLANES * _SUBLANES,
    )
    # Keep grid >= 2 when there is enough data so both v7x TensorCores work.
    if rows >= 2 * _SUBLANES:
        half = pl.cdiv(rows, 2)
        tile_rows = min(tile_rows, max(_SUBLANES, half // _SUBLANES * _SUBLANES))
    tile_rows = min(tile_rows, rows)

    grid = (pl.cdiv(rows, tile_rows),)

    out2d = pl.pallas_call(
        _silu_kernel,
        out_shape=jax.ShapeDtypeStruct((rows, _LANES), x.dtype),
        grid_spec=pltpu.PrefetchScalarGridSpec(
            num_scalar_prefetch=0,
            grid=grid,
            # Last (partial) block, if any, is handled by Pallas block masking —
            # safe for a pure elementwise kernel.
            in_specs=[pl.BlockSpec((tile_rows, _LANES), lambda i: (i, 0))],
            out_specs=pl.BlockSpec((tile_rows, _LANES), lambda i: (i, 0)),
        ),
        compiler_params=pltpu.CompilerParams(
            dimension_semantics=("parallel",),
        ),
    )(x2d)

    return out2d.reshape(-1)[:total].reshape(orig_shape)


class ApplyPallas:
    """JAX/Pallas equivalent of lambo's `Apply(module, dim)` wrapper."""

    def __init__(self, module_fn, dim: int = 0):
        self.module_fn = module_fn
        self.dim = dim

    def __call__(self, x):
        xs = list(x)                      # same as `xs = list(x)` in torch
        xs[self.dim] = self.module_fn(xs[self.dim])
        return xs


if __name__ == "__main__":
    key = jax.random.PRNGKey(0)
    k_x, k_m, k_b1, k_b2 = jax.random.split(key, 4)

    # --- 1) Small NCHW (features, mask) pair, mirroring lambo's usage.
    #        This takes the fast path (launch overhead would dominate).
    x = jax.random.normal(k_x, (2, 4, 16, 16), dtype=jnp.float32)
    mask = (jax.random.uniform(k_m, (2, 1, 16, 16)) > 0.5).astype(jnp.float32)

    apply_mod = ApplyPallas(silu_pallas, dim=0)   # Apply(nn.SiLU(), dim=0)
    out = apply_mod((x, mask))
    out = [jax.block_until_ready(o) for o in out]

    ref = x * jax.nn.sigmoid(x)
    assert out[0].shape == x.shape and out[0].dtype == x.dtype
    assert jnp.allclose(out[0], ref, atol=1e-5, rtol=1e-5)
    assert jnp.array_equal(out[1], mask)          # pass-through untouched

    # --- 2) Larger input that exercises the Pallas kernel path (grid >= 2,
    #        exact multiple of the 4096-element slab chunk).
    xb = jax.random.normal(k_b1, (4, 8, 64, 64), dtype=jnp.float32)   # 512 KiB
    yb = jax.block_until_ready(silu_pallas(xb))
    assert jnp.allclose(yb, xb * jax.nn.sigmoid(xb), atol=1e-5, rtol=1e-5)

    # --- 3) Awkward shape that needs tail padding on the lane-dense slab.
    xc = jax.random.normal(k_b2, (3, 7, 70, 70), dtype=jnp.float32)   # ~402 KiB
    yc = jax.block_until_ready(silu_pallas(xc))
    assert yc.shape == xc.shape and yc.dtype == xc.dtype
    assert jnp.allclose(yc, xc * jax.nn.sigmoid(xc), atol=1e-5, rtol=1e-5)

    print("KERNEL_OK")
</pallas_src>

<mosaic_0001>
module attributes {stable_mosaic.version = 11 : i64} {
  func.func @_silu_kernel(%arg0: i32, %arg1: memref<128x512xf32, #tpu.memory_space<vmem>>, %arg2: memref<128x512xf32, #tpu.memory_space<vmem>>) attributes {dimension_semantics = [#tpu.dimension_semantics<parallel>], iteration_bounds = array<i64: 2>, scalar_prefetch = 0 : i64, scratch_operands = 0 : i64, tpu.core_type = #tpu.core_type<tc>, window_params = [{transform_indices = @transform_0, window_bounds = array<i64: 128, 512>}, {transform_indices = @transform_1, window_bounds = array<i64: 128, 512>}]} {
    %c0 = arith.constant 0 : index
    %c0_0 = arith.constant 0 : index
    %0 = vector.load %arg1[%c0, %c0_0] : memref<128x512xf32, #tpu.memory_space<vmem>>, vector<128x512xf32>
    %1 = arith.negf %0 : vector<128x512xf32>
    %2 = math.exp %1 : vector<128x512xf32>
    %cst = arith.constant 1.000000e+00 : f32
    %3 = vector.broadcast %cst : f32 to vector<128x512xf32>
    %4 = arith.addf %3, %2 : vector<128x512xf32>
    %5 = arith.divf %3, %4 : vector<128x512xf32>
    %6 = arith.mulf %0, %5 : vector<128x512xf32>
    %c0_1 = arith.constant 0 : index
    %c0_2 = arith.constant 0 : index
    %7 = vector.load %arg2[%c0_1, %c0_2] : memref<128x512xf32, #tpu.memory_space<vmem>>, vector<128x512xf32>
    tpu.vector_store %arg2[%c0_1, %c0_2], %6 {strides = array<i32>} : memref<128x512xf32, #tpu.memory_space<vmem>>, vector<128x512xf32>,
    return
  }
  func.func @transform_0(%arg0: i32) -> (i32, i32) {
    %c0_i32 = arith.constant 0 : i32
    %c0_i32_0 = arith.constant 0 : i32
    return %arg0, %c0_i32 : i32, i32
  }
  func.func @transform_1(%arg0: i32) -> (i32, i32) {
    %c0_i32 = arith.constant 0 : i32
    %c0_i32_0 = arith.constant 0 : i32
    return %arg0, %c0_i32 : i32, i32
  }
}

</mosaic_0001>

<llo_original>
// kernel: tpu_custom_call.1
$region0: #{tpu_custom_call.1}
  #allocation0 [shape = 'u32[]', space=smem, size = 0x4, offset = 0x4, fixed_abs, tag = 'smem constant byte address 0x4 - core index']
  #allocation1 [shape = 'u32[144,128]{1,0:T(1,128)}', space=vmem, size = 0x12000, scoped, tag = 'internal scratch']
  %s0 = inlined_call_operand.hbm [shape: f32[256,512], index: 0, kind: input, shape index: {}]
  %s1 = inlined_call_operand.hbm [shape: f32[256,512], index: 1, kind: output, shape index: {}]
  %s2 = sld [smem:[#allocation0]]
  $region41: #{tpu_custom_call.1} parent=0
    _
  %s4 = ssub.s32 1, %s2
  %s5 = scalar_select 0, %s4, %s2
  $region1: #{tpu_custom_call.1} parent=0
    #allocation2 [shape = 'u8[524288]{0}', space=vmem, size = 0x80000, scoped, tag = 'input window, operand 0']
    #allocation3 [shape = 's32[2]{0}', space=sflag, size = 0x8, scoped, tag = 'scoped memory for tpu_custom_call.1']
    #allocation4 [shape = 's32[2]{0}', space=sflag, size = 0x8, scoped, tag = 'scoped memory for tpu_custom_call.1']
    #allocation5 [shape = 'u8[524288]{0}', space=vmem, size = 0x80000, scoped, tag = 'output window, operand 0']
    %6 = vsyncpa [#allocation3], 0
    %s7 = scalar_lea.sflag [#allocation3], 1
    %8 = vsyncpa %s7, 0
    %9 = vsyncpa [#allocation4], 0
    %s10 = scalar_lea.sflag [#allocation4], 1
    %11 = vsyncpa %s10, 0
    loop: start=0, step=1, limit=4
    $region2: #{tpu_custom_call.1} parent=1 // loop_pre_header
      _
    $region3: #{tpu_custom_call.1} parent=1 // loop_header
      %s13 = sphi 0, %s17
      %p14 = scmp.ge.s32.totalorder %s13, 4
      %s23 = sphi 0, %s25
      %s26 = sphi 0, %s23
      %s27 = sphi 0, %s26
      %s43 = sphi 0, %s27
      %s49 = sphi 0, %s51
      %s52 = sphi 0, %s49
      %s53 = sphi 0, %s52
      %s69 = sphi 0, %s53
    $region4: #{tpu_custom_call.1} parent=1 // loop_header_branch
      %16 = sbr.rel (%p14) target = $region8
    $region5: #{tpu_custom_call.1} parent=1 // loop_body
      %s18 = ssub.s32 %s13, 1
      %s19 = ssub.s32 %s13, 2
      %s20 = sadd.s32 %s13, 1
      %s21 = ssub.s32 %s13, %s20
      %p22 = scmp.eq.s32.totalorder %s21, 0
      %s24 = sadd.s32 %s23, 1
      %s25 = scalar_select %p22, %s23, %s24
      %p28 = pneg %p22
      %p29 = scmp.eq.s32.totalorder %s13, 1
      %p30 = por %p28, %p29
      %p31 = scmp.ne.s32.totalorder %s23, %s26
      %p32 = scmp.eq.s32.totalorder %s13, 0
      %p33 = por %p31, %p32
      %p34 = scmp.ne.s32.totalorder %s23, %s26
      %p35 = scmp.eq.s32.totalorder %s18, 1
      %p36 = por %p34, %p35
      %p37 = scmp.ne.s32.totalorder %s26, %s27
      %p38 = scmp.eq.s32.totalorder %s18, 0
      %p39 = por %p37, %p38
      %p40 = scmp.ne.s32.totalorder %s26, %s27
      %p41 = scmp.eq.s32.totalorder %s19, 1
      %p42 = por %p40, %p41
      %p44 = scmp.ne.s32.totalorder %s27, %s43
      %p45 = scmp.eq.s32.totalorder %s19, 0
      %p46 = por %p44, %p45
      %s47 = ssub.s32 %s13, %s20
      %p48 = scmp.eq.s32.totalorder %s47, 0
      %s50 = sadd.s32 %s49, 1
      %s51 = scalar_select %p48, %s49, %s50
      %p54 = pneg %p48
      %p55 = scmp.eq.s32.totalorder %s13, 1
      %p56 = por %p54, %p55
      %p57 = scmp.ne.s32.totalorder %s49, %s52
      %p58 = scmp.eq.s32.totalorder %s13, 0
      %p59 = por %p57, %p58
      %p60 = scmp.ne.s32.totalorder %s49, %s52
      %p61 = scmp.eq.s32.totalorder %s18, 1
      %p62 = por %p60, %p61
      %p63 = scmp.ne.s32.totalorder %s52, %s53
      %p64 = scmp.eq.s32.totalorder %s18, 0
      %p65 = por %p63, %p64
      %p66 = scmp.ne.s32.totalorder %s52, %s53
      %p67 = scmp.eq.s32.totalorder %s19, 1
      %p68 = por %p66, %p67
      %p70 = scmp.ne.s32.totalorder %s53, %s69
      %p71 = scmp.eq.s32.totalorder %s19, 0
      %p72 = por %p70, %p71
      %p73 = scmp.le.s32.totalorder 1, %s13
      %p74 = scmp.lt.s32.totalorder %s13, 3
      %p75 = pnand %p73, %p74
      %p76 = pneg %p75
      // Predicated region
      $region9: #{tpu_custom_call.1} parent=5 // pred_check
        _
      $region10: #{tpu_custom_call.1} parent=5 // pred_check_branch
        %78 = sbr.rel (%p75) target = $region12
      $region11: #{tpu_custom_call.1} parent=5 // pred_region
        %s79 = ssub.s32 %s13, 1
      $region12: #{tpu_custom_call.1} parent=5 // pred_fallthru
        _
      %p80 = scmp.lt.s32.totalorder %s13, 2
      // Predicated region
      $region13: #{tpu_custom_call.1} parent=5 // pred_check
        %p81 = pneg %p80
      $region14: #{tpu_custom_call.1} parent=5 // pred_check_branch
        %83 = sbr.rel (%p81) target = $region16
      $region15: #{tpu_custom_call.1} parent=5 // pred_region
        // Predicated region
        $region17: #{tpu_custom_call.1} parent=15 // pred_check
          %p84 = pneg %p33
        $region18: #{tpu_custom_call.1} parent=15 // pred_check_branch
          %86 = sbr.rel (%p84) target = $region20
        $region19: #{tpu_custom_call.1} parent=15 // pred_region
          %s87 = sand.u32 %s23, 1
          %s88 = scalar_lea.sflag [#allocation3], %s87
          %s89 = sand.u32 %s23, 1
          %s90 = smul.addr %s89, 512
          %s91 = scalar_lea.vmem [#allocation2], %s90
          %s92 = smul.u32 16, %s13
          %s94 = ssub.s32 8192, 8192
          %95 = vsyncadd %s88, %s94
          %s96 = smul.addr %s92, 4
          %s97 = smul.addr %s96, 128
          %s98 = scalar_lea.hbm %s0, %s97
          %s99 = sshll.u32 %s91, 4
          %s100 = int_to_ptr.vmem [resolvable:$true] %s99
          %105 = dma.hbm_to_vmem [thread:$0]  %s98, 8192, %s100, %s88, 512, 512, 32
        $region20: #{tpu_custom_call.1} parent=15 // pred_fallthru
          _
      $region16: #{tpu_custom_call.1} parent=5 // pred_fallthru
        _
      %p106 = scmp.le.s32.totalorder 1, %s13
      %p107 = scmp.lt.s32.totalorder %s13, 3
      %p108 = pnand %p106, %p107
      %p109 = pneg %p108
      // Predicated region
      $region21: #{tpu_custom_call.1} parent=5 // pred_check
        _
      $region22: #{tpu_custom_call.1} parent=5 // pred_check_branch
        %111 = sbr.rel (%p108) target = $region24
      $region23: #{tpu_custom_call.1} parent=5 // pred_region
        %s112 = ssub.s32 %s13, 1
        %s113 = sand.u32 %s26, 1
        %s114 = scalar_lea.sflag [#allocation3], %s113
        %s115 = sand.u32 %s26, 1
        %s116 = smul.addr %s115, 512
        %s117 = scalar_lea.vmem [#allocation2], %s116
        // Predicated region
        $region25: #{tpu_custom_call.1} parent=23 // pred_check
          %p118 = pneg %p39
        $region26: #{tpu_custom_call.1} parent=23 // pred_check_branch
          %120 = sbr.rel (%p118) target = $region28
        $region27: #{tpu_custom_call.1} parent=23 // pred_region
          %121 = dma.done %s114, 8192
        $region28: #{tpu_custom_call.1} parent=23 // pred_fallthru
          _
        %s122 = sand.u32 %s26, 1
        %s123 = scalar_lea.sflag [#allocation3], %s122
        %s124 = sand.u32 %s26, 1
        %s125 = smul.addr %s124, 512
        %s126 = scalar_lea.vmem [#allocation2], %s125
        %p127 = pneg %p39
        %p128 = pneg %p36
        %p129 = pneg %p65
        %p130 = pneg %p62
        %s131 = sand.u32 %s52, 1
        %s132 = scalar_lea.sflag [#allocation4], %s131
        %s133 = sand.u32 %s52, 1
        %s134 = smul.addr %s133, 512
        %s135 = scalar_lea.vmem [#allocation5], %s134
        %s136 = smul.u32 16, %s18
        %s137 = smul.u32 16, %s18
        %v138 = vld [vmem:[%s117] sm:$0xff]
        %v139 = vld [vmem:[%s117 + $0x8] sm:$0xff]
        %v140 = vld [vmem:[%s117 + $0x10] sm:$0xff]
        %v141 = vld [vmem:[%s117 + $0x18] sm:$0xff]
        %v142 = vld [vmem:[%s117 + $0x20] sm:$0xff]
        %v143 = vld [vmem:[%s117 + $0x28] sm:$0xff]
        %v144 = vld [vmem:[%s117 + $0x30] sm:$0xff]
        %v145 = vld [vmem:[%s117 + $0x38] sm:$0xff]
        %v146 = vld [vmem:[%s117 + $0x40] sm:$0xff]
        %v147 = vld [vmem:[%s117 + $0x48] sm:$0xff]
        %v148 = vld [vmem:[%s117 + $0x50] sm:$0xff]
        %v149 = vld [vmem:[%s117 + $0x58] sm:$0xff]
        %v150 = vld [vmem:[%s117 + $0x60] sm:$0xff]
        %v151 = vld [vmem:[%s117 + $0x68] sm:$0xff]
        %v152 = vld [vmem:[%s117 + $0x70] sm:$0xff]
        %v153 = vld [vmem:[%s117 + $0x78] sm:$0xff]
        %v154 = vld [vmem:[%s117 + $0x80] sm:$0xff]
        %v155 = vld [vmem:[%s117 + $0x88] sm:$0xff]
        %v156 = vld [vmem:[%s117 + $0x90] sm:$0xff]
        %v157 = vld [vmem:[%s117 + $0x98] sm:$0xff]
        %v158 = vld [vmem:[%s117 + $0xa0] sm:$0xff]
        %v159 = vld [vmem:[%s117 + $0xa8] sm:$0xff]
        %v160 = vld [vmem:[%s117 + $0xb0] sm:$0xff]
        %v161 = vld [vmem:[%s117 + $0xb8] sm:$0xff]
        %v162 = vld [vmem:[%s117 + $0xc0] sm:$0xff]
        %v163 = vld [vmem:[%s117 + $0xc8] sm:$0xff]
        %v164 = vld [vmem:[%s117 + $0xd0] sm:$0xff]
        %v165 = vld [vmem:[%s117 + $0xd8] sm:$0xff]
        %v166 = vld [vmem:[%s117 + $0xe0] sm:$0xff]
        %v167 = vld [vmem:[%s117 + $0xe8] sm:$0xff]
        %v168 = vld [vmem:[%s117 + $0xf0] sm:$0xff]
        %v169 = vld [vmem:[%s117 + $0xf8] sm:$0xff]
        %v170 = vld [vmem:[%s117 + $0x100] sm:$0xff]
        %v171 = vld [vmem:[%s117 + $0x108] sm:$0xff]
        %v172 = vld [vmem:[%s117 + $0x110] sm:$0xff]
        %v173 = vld [vmem:[%s117 + $0x118] sm:$0xff]
        %v174 = vld [vmem:[%s117 + $0x120] sm:$0xff]
        %v175 = vld [vmem:[%s117 + $0x128] sm:$0xff]
        %v176 = vld [vmem:[%s117 + $0x130] sm:$0xff]
        %v177 = vld [vmem:[%s117 + $0x138] sm:$0xff]
        %v178 = vld [vmem:[%s117 + $0x140] sm:$0xff]
        %v179 = vld [vmem:[%s117 + $0x148] sm:$0xff]
        %v180 = vld [vmem:[%s117 + $0x150] sm:$0xff]
        %v181 = vld [vmem:[%s117 + $0x158] sm:$0xff]
        %v182 = vld [vmem:[%s117 + $0x160] sm:$0xff]
        %v183 = vld [vmem:[%s117 + $0x168] sm:$0xff]
        %v184 = vld [vmem:[%s117 + $0x170] sm:$0xff]
        %v185 = vld [vmem:[%s117 + $0x178] sm:$0xff]
        %v186 = vld [vmem:[%s117 + $0x180] sm:$0xff]
        %v187 = vld [vmem:[%s117 + $0x188] sm:$0xff]
        %v188 = vld [vmem:[%s117 + $0x190] sm:$0xff]
        %v189 = vld [vmem:[%s117 + $0x198] sm:$0xff]
        %v190 = vld [vmem:[%s117 + $0x1a0] sm:$0xff]
        %v191 = vld [vmem:[%s117 + $0x1a8] sm:$0xff]
        %v192 = vld [vmem:[%s117 + $0x1b0] sm:$0xff]
        %v193 = vld [vmem:[%s117 + $0x1b8] sm:$0xff]
        %v194 = vld [vmem:[%s117 + $0x1c0] sm:$0xff]
        %v195 = vld [vmem:[%s117 + $0x1c8] sm:$0xff]
        %v196 = vld [vmem:[%s117 + $0x1d0] sm:$0xff]
        %v197 = vld [vmem:[%s117 + $0x1d8] sm:$0xff]
        %v198 = vld [vmem:[%s117 + $0x1e0] sm:$0xff]
        %v199 = vld [vmem:[%s117 + $0x1e8] sm:$0xff]
        %v200 = vld [vmem:[%s117 + $0x1f0] sm:$0xff]
        %v201 = vld [vmem:[%s117 + $0x1f8] sm:$0xff]
        %v202 = vxor.u32 %v138, 2147483648
        %v203 = vxor.u32 %v139, 2147483648
        %v204 = vxor.u32 %v140, 2147483648
        %v205 = vxor.u32 %v141, 2147483648
        %v206 = vxor.u32 %v142, 2147483648
        %v207 = vxor.u32 %v143, 2147483648
        %v208 = vxor.u32 %v144, 2147483648
        %v209 = vxor.u32 %v145, 2147483648
        %v210 = vxor.u32 %v146, 2147483648
        %v211 = vxor.u32 %v147, 2147483648
        %v212 = vxor.u32 %v148, 2147483648
        %v213 = vxor.u32 %v149, 2147483648
        %v214 = vxor.u32 %v150, 2147483648
        %v215 = vxor.u32 %v151, 2147483648
        %v216 = vxor.u32 %v152, 2147483648
        %v217 = vxor.u32 %v153, 2147483648
        %v218 = vxor.u32 %v154, 2147483648
        %v219 = vxor.u32 %v155, 2147483648
        %v220 = vxor.u32 %v156, 2147483648
        %v221 = vxor.u32 %v157, 2147483648
        %v222 = vxor.u32 %v158, 2147483648
        %v223 = vxor.u32 %v159, 2147483648
        %v224 = vxor.u32 %v160, 2147483648
        %v225 = vxor.u32 %v161, 2147483648
        %v226 = vxor.u32 %v162, 2147483648
        %v227 = vxor.u32 %v163, 2147483648
        %v228 = vxor.u32 %v164, 2147483648
        %v229 = vxor.u32 %v165, 2147483648
        %v230 = vxor.u32 %v166, 2147483648
        %v231 = vxor.u32 %v167, 2147483648
        %v232 = vxor.u32 %v168, 2147483648
        %v233 = vxor.u32 %v169, 2147483648
        %v234 = vxor.u32 %v170, 2147483648
        %v235 = vxor.u32 %v171, 2147483648
        %v236 = vxor.u32 %v172, 2147483648
        %v237 = vxor.u32 %v173, 2147483648
        %v238 = vxor.u32 %v174, 2147483648
        %v239 = vxor.u32 %v175, 2147483648
        %v240 = vxor.u32 %v176, 2147483648
        %v241 = vxor.u32 %v177, 2147483648
        %v242 = vxor.u32 %v178, 2147483648
        %v243 = vxor.u32 %v179, 2147483648
        %v244 = vxor.u32 %v180, 2147483648
        %v245 = vxor.u32 %v181, 2147483648
        %v246 = vxor.u32 %v182, 2147483648
        %v247 = vxor.u32 %v183, 2147483648
        %v248 = vxor.u32 %v184, 2147483648
        %v249 = vxor.u32 %v185, 2147483648
        %v250 = vxor.u32 %v186, 2147483648
        %v251 = vxor.u32 %v187, 2147483648
        %v252 = vxor.u32 %v188, 2147483648
        %v253 = vxor.u32 %v189, 2147483648
        %v254 = vxor.u32 %v190, 2147483648
        %v255 = vxor.u32 %v191, 2147483648
        %v256 = vxor.u32 %v192, 2147483648
        %v257 = vxor.u32 %v193, 2147483648
        %v258 = vxor.u32 %v194, 2147483648
        %v259 = vxor.u32 %v195, 2147483648
        %v260 = vxor.u32 %v196, 2147483648
        %v261 = vxor.u32 %v197, 2147483648
        %v262 = vxor.u32 %v198, 2147483648
        %v263 = vxor.u32 %v199, 2147483648
        %v264 = vxor.u32 %v200, 2147483648
        %v265 = vxor.u32 %v201, 2147483648
        %v266 = vmul.f32 %v202, 1.442695
        %v267 = vpow.pop %v266
        %v268 = vmul.f32 %v203, 1.442695
        %v269 = vpow.pop %v268
        %v270 = vmul.f32 %v204, 1.442695
        %v271 = vpow.pop %v270
        %v272 = vmul.f32 %v205, 1.442695
        %v273 = vpow.pop %v272
        %v274 = vmul.f32 %v206, 1.442695
        %v275 = vpow.pop %v274
        %v276 = vmul.f32 %v207, 1.442695
        %v277 = vpow.pop %v276
        %v278 = vmul.f32 %v208, 1.442695
        %v279 = vpow.pop %v278
        %v280 = vmul.f32 %v209, 1.442695
        %v281 = vpow.pop %v280
        %v282 = vmul.f32 %v210, 1.442695
        %v283 = vpow.pop %v282
        %v284 = vmul.f32 %v211, 1.442695
        %v285 = vpow.pop %v284
        %v286 = vmul.f32 %v212, 1.442695
        %v287 = vpow.pop %v286
        %v288 = vmul.f32 %v213, 1.442695
        %v289 = vpow.pop %v288
        %v290 = vmul.f32 %v214, 1.442695
        %v291 = vpow.pop %v290
        %v292 = vmul.f32 %v215, 1.442695
        %v293 = vpow.pop %v292
        %v294 = vmul.f32 %v216, 1.442695
        %v295 = vpow.pop %v294
        %v296 = vmul.f32 %v217, 1.442695
        %v297 = vpow.pop %v296
        %v298 = vmul.f32 %v218, 1.442695
        %v299 = vpow.pop %v298
        %v300 = vmul.f32 %v219, 1.442695
        %v301 = vpow.pop %v300
        %v302 = vmul.f32 %v220, 1.442695
        %v303 = vpow.pop %v302
        %v304 = vmul.f32 %v221, 1.442695
        %v305 = vpow.pop %v304
        %v306 = vmul.f32 %v222, 1.442695
        %v307 = vpow.pop %v306
        %v308 = vmul.f32 %v223, 1.442695
        %v309 = vpow.pop %v308
        %v310 = vmul.f32 %v224, 1.442695
        %v311 = vpow.pop %v310
        %v312 = vmul.f32 %v225, 1.442695
        %v313 = vpow.pop %v312
        %v314 = vmul.f32 %v226, 1.442695
        %v315 = vpow.pop %v314
        %v316 = vmul.f32 %v227, 1.442695
        %v317 = vpow.pop %v316
        %v318 = vmul.f32 %v228, 1.442695
        %v319 = vpow.pop %v318
        %v320 = vmul.f32 %v229, 1.442695
        %v321 = vpow.pop %v320
        %v322 = vmul.f32 %v230, 1.442695
        %v323 = vpow.pop %v322
        %v324 = vmul.f32 %v231, 1.442695
        %v325 = vpow.pop %v324
        %v326 = vmul.f32 %v232, 1.442695
        %v327 = vpow.pop %v326
        %v328 = vmul.f32 %v233, 1.442695
        %v329 = vpow.pop %v328
        %v330 = vmul.f32 %v234, 1.442695
        %v331 = vpow.pop %v330
        %v332 = vmul.f32 %v235, 1.442695
        %v333 = vpow.pop %v332
        %v334 = vmul.f32 %v236, 1.442695
        %v335 = vpow.pop %v334
        %v336 = vmul.f32 %v237, 1.442695
        %v337 = vpow.pop %v336
        %v338 = vmul.f32 %v238, 1.442695
        %v339 = vpow.pop %v338
        %v340 = vmul.f32 %v239, 1.442695
        %v341 = vpow.pop %v340
        %v342 = vmul.f32 %v240, 1.442695
        %v343 = vpow.pop %v342
        %v344 = vmul.f32 %v241, 1.442695
        %v345 = vpow.pop %v344
        %v346 = vmul.f32 %v242, 1.442695
        %v347 = vpow.pop %v346
        %v348 = vmul.f32 %v243, 1.442695
        %v349 = vpow.pop %v348
        %v350 = vmul.f32 %v244, 1.442695
        %v351 = vpow.pop %v350
        %v352 = vmul.f32 %v245, 1.442695
        %v353 = vpow.pop %v352
        %v354 = vmul.f32 %v246, 1.442695
        %v355 = vpow.pop %v354
        %v356 = vmul.f32 %v247, 1.442695
        %v357 = vpow.pop %v356
        %v358 = vmul.f32 %v248, 1.442695
        %v359 = vpow.pop %v358
        %v360 = vmul.f32 %v249, 1.442695
        %v361 = vpow.pop %v360
        %v362 = vmul.f32 %v250, 1.442695
        %v363 = vpow.pop %v362
        %v364 = vmul.f32 %v251, 1.442695
        %v365 = vpow.pop %v364
        %v366 = vmul.f32 %v252, 1.442695
        %v367 = vpow.pop %v366
        %v368 = vmul.f32 %v253, 1.442695
        %v369 = vpow.pop %v368
        %v370 = vmul.f32 %v254, 1.442695
        %v371 = vpow.pop %v370
        %v372 = vmul.f32 %v255, 1.442695
        %v373 = vpow.pop %v372
        %v374 = vmul.f32 %v256, 1.442695
        %v375 = vpow.pop %v374
        %v376 = vmul.f32 %v257, 1.442695
        %v377 = vpow.pop %v376
        %v378 = vmul.f32 %v258, 1.442695
        %v379 = vpow.pop %v378
        %v380 = vmul.f32 %v259, 1.442695
        %v381 = vpow.pop %v380
        %v382 = vmul.f32 %v260, 1.442695
        %v383 = vpow.pop %v382
        %v384 = vmul.f32 %v261, 1.442695
        %v385 = vpow.pop %v384
        %v386 = vmul.f32 %v262, 1.442695
        %v387 = vpow.pop %v386
        %v388 = vmul.f32 %v263, 1.442695
        %v389 = vpow.pop %v388
        %v390 = vmul.f32 %v264, 1.442695
        %v391 = vpow.pop %v390
        %v392 = vmul.f32 %v265, 1.442695
        %v393 = vpow.pop %v392
        %v394 = vadd.f32 %v267, 1.0
        %v395 = vadd.f32 %v269, 1.0
        %v396 = vadd.f32 %v271, 1.0
        %v397 = vadd.f32 %v273, 1.0
        %v398 = vadd.f32 %v275, 1.0
        %v399 = vadd.f32 %v277, 1.0
        %v400 = vadd.f32 %v279, 1.0
        %v401 = vadd.f32 %v281, 1.0
        %v402 = vadd.f32 %v283, 1.0
        %v403 = vadd.f32 %v285, 1.0
        %v404 = vadd.f32 %v287, 1.0
        %v405 = vadd.f32 %v289, 1.0
        %v406 = vadd.f32 %v291, 1.0
        %v407 = vadd.f32 %v293, 1.0
        %v408 = vadd.f32 %v295, 1.0
        %v409 = vadd.f32 %v297, 1.0
        %v410 = vadd.f32 %v299, 1.0
        %v411 = vadd.f32 %v301, 1.0
        %v412 = vadd.f32 %v303, 1.0
        %v413 = vadd.f32 %v305, 1.0
        %v414 = vadd.f32 %v307, 1.0
        %v415 = vadd.f32 %v309, 1.0
        %v416 = vadd.f32 %v311, 1.0
        %v417 = vadd.f32 %v313, 1.0
        %v418 = vadd.f32 %v315, 1.0
        %v419 = vadd.f32 %v317, 1.0
        %v420 = vadd.f32 %v319, 1.0
        %v421 = vadd.f32 %v321, 1.0
        %v422 = vadd.f32 %v323, 1.0
        %v423 = vadd.f32 %v325, 1.0
        %v424 = vadd.f32 %v327, 1.0
        %v425 = vadd.f32 %v329, 1.0
        %v426 = vadd.f32 %v331, 1.0
        %v427 = vadd.f32 %v333, 1.0
        %v428 = vadd.f32 %v335, 1.0
        %v429 = vadd.f32 %v337, 1.0
        %v430 = vadd.f32 %v339, 1.0
        %v431 = vadd.f32 %v341, 1.0
        %v432 = vadd.f32 %v343, 1.0
        %v433 = vadd.f32 %v345, 1.0
        %v434 = vadd.f32 %v347, 1.0
        %v435 = vadd.f32 %v349, 1.0
        %v436 = vadd.f32 %v351, 1.0
        %v437 = vadd.f32 %v353, 1.0
        %v438 = vadd.f32 %v355, 1.0
        %v439 = vadd.f32 %v357, 1.0
        %v440 = vadd.f32 %v359, 1.0
        %v441 = vadd.f32 %v361, 1.0
        %v442 = vadd.f32 %v363, 1.0
        %v443 = vadd.f32 %v365, 1.0
        %v444 = vadd.f32 %v367, 1.0
        %v445 = vadd.f32 %v369, 1.0
        %v446 = vadd.f32 %v371, 1.0
        %v447 = vadd.f32 %v373, 1.0
        %v448 = vadd.f32 %v375, 1.0
        %v449 = vadd.f32 %v377, 1.0
        %v450 = vadd.f32 %v379, 1.0
        %v451 = vadd.f32 %v381, 1.0
        %v452 = vadd.f32 %v383, 1.0
        %v453 = vadd.f32 %v385, 1.0
        %v454 = vadd.f32 %v387, 1.0
        %v455 = vadd.f32 %v389, 1.0
        %v456 = vadd.f32 %v391, 1.0
        %v457 = vadd.f32 %v393, 1.0
        %v458 = vrcp.pop %v394
        %v459 = vmul.f32 1.0, %v458
        %v460 = vrcp.pop %v395
        %v461 = vmul.f32 1.0, %v460
        %v462 = vrcp.pop %v396
        %v463 = vmul.f32 1.0, %v462
        %v464 = vrcp.pop %v397
        %v465 = vmul.f32 1.0, %v464
        %v466 = vrcp.pop %v398
        %v467 = vmul.f32 1.0, %v466
        %v468 = vrcp.pop %v399
        %v469 = vmul.f32 1.0, %v468
        %v470 = vrcp.pop %v400
        %v471 = vmul.f32 1.0, %v470
        %v472 = vrcp.pop %v401
        %v473 = vmul.f32 1.0, %v472
        %v474 = vrcp.pop %v402
        %v475 = vmul.f32 1.0, %v474
        %v476 = vrcp.pop %v403
        %v477 = vmul.f32 1.0, %v476
        %v478 = vrcp.pop %v404
        %v479 = vmul.f32 1.0, %v478
        %v480 = vrcp.pop %v405
        %v481 = vmul.f32 1.0, %v480
        %v482 = vrcp.pop %v406
        %v483 = vmul.f32 1.0, %v482
        %v484 = vrcp.pop %v407
        %v485 = vmul.f32 1.0, %v484
        %v486 = vrcp.pop %v408
        %v487 = vmul.f32 1.0, %v486
        %v488 = vrcp.pop %v409
        %v489 = vmul.f32 1.0, %v488
        %v490 = vrcp.pop %v410
        %v491 = vmul.f32 1.0, %v490
        %v492 = vrcp.pop %v411
        %v493 = vmul.f32 1.0, %v492
        %v494 = vrcp.pop %v412
        %v495 = vmul.f32 1.0, %v494
        %v496 = vrcp.pop %v413
        %v497 = vmul.f32 1.0, %v496
        %v498 = vrcp.pop %v414
        %v499 = vmul.f32 1.0, %v498
        %v500 = vrcp.pop %v415
        %v501 = vmul.f32 1.0, %v500
        %v502 = vrcp.pop %v416
        %v503 = vmul.f32 1.0, %v502
        %v504 = vrcp.pop %v417
        %v505 = vmul.f32 1.0, %v504
        %v506 = vrcp.pop %v418
        %v507 = vmul.f32 1.0, %v506
        %v508 = vrcp.pop %v419
        %v509 = vmul.f32 1.0, %v508
        %v510 = vrcp.pop %v420
        %v511 = vmul.f32 1.0, %v510
        %v512 = vrcp.pop %v421
        %v513 = vmul.f32 1.0, %v512
        %v514 = vrcp.pop %v422
        %v515 = vmul.f32 1.0, %v514
        %v516 = vrcp.pop %v423
        %v517 = vmul.f32 1.0, %v516
        %v518 = vrcp.pop %v424
        %v519 = vmul.f32 1.0, %v518
        %v520 = vrcp.pop %v425
        %v521 = vmul.f32 1.0, %v520
        %v522 = vrcp.pop %v426
        %v523 = vmul.f32 1.0, %v522
        %v524 = vrcp.pop %v427
        %v525 = vmul.f32 1.0, %v524
        %v526 = vrcp.pop %v428
        %v527 = vmul.f32 1.0, %v526
        %v528 = vrcp.pop %v429
        %v529 = vmul.f32 1.0, %v528
        %v530 = vrcp.pop %v430
        %v531 = vmul.f32 1.0, %v530
        %v532 = vrcp.pop %v431
        %v533 = vmul.f32 1.0, %v532
        %v534 = vrcp.pop %v432
        %v535 = vmul.f32 1.0, %v534
        %v536 = vrcp.pop %v433
        %v537 = vmul.f32 1.0, %v536
        %v538 = vrcp.pop %v434
        %v539 = vmul.f32 1.0, %v538
        %v540 = vrcp.pop %v435
        %v541 = vmul.f32 1.0, %v540
        %v542 = vrcp.pop %v436
        %v543 = vmul.f32 1.0, %v542
        %v544 = vrcp.pop %v437
        %v545 = vmul.f32 1.0, %v544
        %v546 = vrcp.pop %v438
        %v547 = vmul.f32 1.0, %v546
        %v548 = vrcp.pop %v439
        %v549 = vmul.f32 1.0, %v548
        %v550 = vrcp.pop %v440
        %v551 = vmul.f32 1.0, %v550
        %v552 = vrcp.pop %v441
        %v553 = vmul.f32 1.0, %v552
        %v554 = vrcp.pop %v442
        %v555 = vmul.f32 1.0, %v554
        %v556 = vrcp.pop %v443
        %v557 = vmul.f32 1.0, %v556
        %v558 = vrcp.pop %v444
        %v559 = vmul.f32 1.0, %v558
        %v560 = vrcp.pop %v445
        %v561 = vmul.f32 1.0, %v560
        %v562 = vrcp.pop %v446
        %v563 = vmul.f32 1.0, %v562
        %v564 = vrcp.pop %v447
        %v565 = vmul.f32 1.0, %v564
        %v566 = vrcp.pop %v448
        %v567 = vmul.f32 1.0, %v566
        %v568 = vrcp.pop %v449
        %v569 = vmul.f32 1.0, %v568
        %v570 = vrcp.pop %v450
        %v571 = vmul.f32 1.0, %v570
        %v572 = vrcp.pop %v451
        %v573 = vmul.f32 1.0, %v572
        %v574 = vrcp.pop %v452
        %v575 = vmul.f32 1.0, %v574
        %v576 = vrcp.pop %v453
        %v577 = vmul.f32 1.0, %v576
        %v578 = vrcp.pop %v454
        %v579 = vmul.f32 1.0, %v578
        %v580 = vrcp.pop %v455
        %v581 = vmul.f32 1.0, %v580
        %v582 = vrcp.pop %v456
        %v583 = vmul.f32 1.0, %v582
        %v584 = vrcp.pop %v457
        %v585 = vmul.f32 1.0, %v584
        %v586 = vmul.f32 %v138, %v459
        %v587 = vmul.f32 %v139, %v461
        %v588 = vmul.f32 %v140, %v463
        %v589 = vmul.f32 %v141, %v465
        %v590 = vmul.f32 %v142, %v467
        %v591 = vmul.f32 %v143, %v469
        %v592 = vmul.f32 %v144, %v471
        %v593 = vmul.f32 %v145, %v473
        %v594 = vmul.f32 %v146, %v475
        %v595 = vmul.f32 %v147, %v477
        %v596 = vmul.f32 %v148, %v479
        %v597 = vmul.f32 %v149, %v481
        %v598 = vmul.f32 %v150, %v483
        %v599 = vmul.f32 %v151, %v485
        %v600 = vmul.f32 %v152, %v487
        %v601 = vmul.f32 %v153, %v489
        %v602 = vmul.f32 %v154, %v491
        %v603 = vmul.f32 %v155, %v493
        %v604 = vmul.f32 %v156, %v495
        %v605 = vmul.f32 %v157, %v497
        %v606 = vmul.f32 %v158, %v499
        %v607 = vmul.f32 %v159, %v501
        %v608 = vmul.f32 %v160, %v503
        %v609 = vmul.f32 %v161, %v505
        %v610 = vmul.f32 %v162, %v507
        %v611 = vmul.f32 %v163, %v509
        %v612 = vmul.f32 %v164, %v511
        %v613 = vmul.f32 %v165, %v513
        %v614 = vmul.f32 %v166, %v515
        %v615 = vmul.f32 %v167, %v517
        %v616 = vmul.f32 %v168, %v519
        %v617 = vmul.f32 %v169, %v521
        %v618 = vmul.f32 %v170, %v523
        %v619 = vmul.f32 %v171, %v525
        %v620 = vmul.f32 %v172, %v527
        %v621 = vmul.f32 %v173, %v529
        %v622 = vmul.f32 %v174, %v531
        %v623 = vmul.f32 %v175, %v533
        %v624 = vmul.f32 %v176, %v535
        %v625 = vmul.f32 %v177, %v537
        %v626 = vmul.f32 %v178, %v539
        %v627 = vmul.f32 %v179, %v541
        %v628 = vmul.f32 %v180, %v543
        %v629 = vmul.f32 %v181, %v545
        %v630 = vmul.f32 %v182, %v547
        %v631 = vmul.f32 %v183, %v549
        %v632 = vmul.f32 %v184, %v551
        %v633 = vmul.f32 %v185, %v553
        %v634 = vmul.f32 %v186, %v555
        %v635 = vmul.f32 %v187, %v557
        %v636 = vmul.f32 %v188, %v559
        %v637 = vmul.f32 %v189, %v561
        %v638 = vmul.f32 %v190, %v563
        %v639 = vmul.f32 %v191, %v565
        %v640 = vmul.f32 %v192, %v567
        %v641 = vmul.f32 %v193, %v569
        %v642 = vmul.f32 %v194, %v571
        %v643 = vmul.f32 %v195, %v573
        %v644 = vmul.f32 %v196, %v575
        %v645 = vmul.f32 %v197, %v577
        %v646 = vmul.f32 %v198, %v579
        %v647 = vmul.f32 %v199, %v581
        %v648 = vmul.f32 %v200, %v583
        %v649 = vmul.f32 %v201, %v585
        %650 = vst [vmem:[%s135] sm:$0xff] %v586
        %651 = vst [vmem:[%s135 + $0x8] sm:$0xff] %v587
        %652 = vst [vmem:[%s135 + $0x10] sm:$0xff] %v588
        %653 = vst [vmem:[%s135 + $0x18] sm:$0xff] %v589
        %654 = vst [vmem:[%s135 + $0x20] sm:$0xff] %v590
        %655 = vst [vmem:[%s135 + $0x28] sm:$0xff] %v591
        %656 = vst [vmem:[%s135 + $0x30] sm:$0xff] %v592
        %657 = vst [vmem:[%s135 + $0x38] sm:$0xff] %v593
        %658 = vst [vmem:[%s135 + $0x40] sm:$0xff] %v594
        %659 = vst [vmem:[%s135 + $0x48] sm:$0xff] %v595
        %660 = vst [vmem:[%s135 + $0x50] sm:$0xff] %v596
        %661 = vst [vmem:[%s135 + $0x58] sm:$0xff] %v597
        %662 = vst [vmem:[%s135 + $0x60] sm:$0xff] %v598
        %663 = vst [vmem:[%s135 + $0x68] sm:$0xff] %v599
        %664 = vst [vmem:[%s135 + $0x70] sm:$0xff] %v600
        %665 = vst [vmem:[%s135 + $0x78] sm:$0xff] %v601
        %666 = vst [vmem:[%s135 + $0x80] sm:$0xff] %v602
        %667 = vst [vmem:[%s135 + $0x88] sm:$0xff] %v603
        %668 = vst [vmem:[%s135 + $0x90] sm:$0xff] %v604
        %669 = vst [vmem:[%s135 + $0x98] sm:$0xff] %v605
        %670 = vst [vmem:[%s135 + $0xa0] sm:$0xff] %v606
        %671 = vst [vmem:[%s135 + $0xa8] sm:$0xff] %v607
        %672 = vst [vmem:[%s135 + $0xb0] sm:$0xff] %v608
        %673 = vst [vmem:[%s135 + $0xb8] sm:$0xff] %v609
        %674 = vst [vmem:[%s135 + $0xc0] sm:$0xff] %v610
        %675 = vst [vmem:[%s135 + $0xc8] sm:$0xff] %v611
        %676 = vst [vmem:[%s135 + $0xd0] sm:$0xff] %v612
        %677 = vst [vmem:[%s135 + $0xd8] sm:$0xff] %v613
        %678 = vst [vmem:[%s135 + $0xe0] sm:$0xff] %v614
        %679 = vst [vmem:[%s135 + $0xe8] sm:$0xff] %v615
        %680 = vst [vmem:[%s135 + $0xf0] sm:$0xff] %v616
        %681 = vst [vmem:[%s135 + $0xf8] sm:$0xff] %v617
        %682 = vst [vmem:[%s135 + $0x100] sm:$0xff] %v618
        %683 = vst [vmem:[%s135 + $0x108] sm:$0xff] %v619
        %684 = vst [vmem:[%s135 + $0x110] sm:$0xff] %v620
        %685 = vst [vmem:[%s135 + $0x118] sm:$0xff] %v621
        %686 = vst [vmem:[%s135 + $0x120] sm:$0xff] %v622
        %687 = vst [vmem:[%s135 + $0x128] sm:$0xff] %v623
        %688 = vst [vmem:[%s135 + $0x130] sm:$0xff] %v624
        %689 = vst [vmem:[%s135 + $0x138] sm:$0xff] %v625
        %690 = vst [vmem:[%s135 + $0x140] sm:$0xff] %v626
        %691 = vst [vmem:[%s135 + $0x148] sm:$0xff] %v627
        %692 = vst [vmem:[%s135 + $0x150] sm:$0xff] %v628
        %693 = vst [vmem:[%s135 + $0x158] sm:$0xff] %v629
        %694 = vst [vmem:[%s135 + $0x160] sm:$0xff] %v630
        %695 = vst [vmem:[%s135 + $0x168] sm:$0xff] %v631
        %696 = vst [vmem:[%s135 + $0x170] sm:$0xff] %v632
        %697 = vst [vmem:[%s135 + $0x178] sm:$0xff] %v633
        %698 = vst [vmem:[%s135 + $0x180] sm:$0xff] %v634
        %699 = vst [vmem:[%s135 + $0x188] sm:$0xff] %v635
        %700 = vst [vmem:[%s135 + $0x190] sm:$0xff] %v636
        %701 = vst [vmem:[%s135 + $0x198] sm:$0xff] %v637
        %702 = vst [vmem:[%s135 + $0x1a0] sm:$0xff] %v638
        %703 = vst [vmem:[%s135 + $0x1a8] sm:$0xff] %v639
        %704 = vst [vmem:[%s135 + $0x1b0] sm:$0xff] %v640
        %705 = vst [vmem:[%s135 + $0x1b8] sm:$0xff] %v641
        %706 = vst [vmem:[%s135 + $0x1c0] sm:$0xff] %v642
        %707 = vst [vmem:[%s135 + $0x1c8] sm:$0xff] %v643
        %708 = vst [vmem:[%s135 + $0x1d0] sm:$0xff] %v644
        %709 = vst [vmem:[%s135 + $0x1d8] sm:$0xff] %v645
        %710 = vst [vmem:[%s135 + $0x1e0] sm:$0xff] %v646
        %711 = vst [vmem:[%s135 + $0x1e8] sm:$0xff] %v647
        %712 = vst [vmem:[%s135 + $0x1f0] sm:$0xff] %v648
        %713 = vst [vmem:[%s135 + $0x1f8] sm:$0xff] %v649
        %s714 = sand.u32 %s52, 1
        %s715 = scalar_lea.sflag [#allocation4], %s714
        %s716 = sand.u32 %s52, 1
        %s717 = smul.addr %s716, 512
        %s718 = scalar_lea.vmem [#allocation5], %s717
        // Predicated region
        $region29: #{tpu_custom_call.1} parent=23 // pred_check
          %p719 = pneg %p62
        $region30: #{tpu_custom_call.1} parent=23 // pred_check_branch
          %721 = sbr.rel (%p719) target = $region32
        $region31: #{tpu_custom_call.1} parent=23 // pred_region
          %s722 = smul.u32 16, %s18
          %s724 = ssub.s32 8192, 8192
          %725 = vsyncadd %s715, %s724
          %s726 = smul.addr %s722, 4
          %s727 = smul.addr %s726, 128
          %s728 = scalar_lea.hbm %s1, %s727
          %s729 = sshll.u32 %s718, 4
          %s730 = int_to_ptr.vmem [resolvable:$true] %s729
          %735 = dma.vmem_to_hbm [thread:$0]  %s730, 8192, %s728, %s715, 512, 512, 32
        $region32: #{tpu_custom_call.1} parent=23 // pred_fallthru
          _
      $region24: #{tpu_custom_call.1} parent=5 // pred_fallthru
        _
      %p736 = scmp.le.s32.totalorder 2, %s13
      // Predicated region
      $region33: #{tpu_custom_call.1} parent=5 // pred_check
        %p737 = pneg %p736
      $region34: #{tpu_custom_call.1} parent=5 // pred_check_branch
        %739 = sbr.rel (%p737) target = $region36
      $region35: #{tpu_custom_call.1} parent=5 // pred_region
        %s740 = ssub.s32 %s13, 2
        // Predicated region
        $region37: #{tpu_custom_call.1} parent=35 // pred_check
          %p741 = pneg %p68
        $region38: #{tpu_custom_call.1} parent=35 // pred_check_branch
          %743 = sbr.rel (%p741) target = $region40
        $region39: #{tpu_custom_call.1} parent=35 // pred_region
          %s744 = sand.u32 %s53, 1
          %s745 = scalar_lea.sflag [#allocation4], %s744
          %s746 = sand.u32 %s53, 1
          %s747 = smul.addr %s746, 512
          %s748 = scalar_lea.vmem [#allocation5], %s747
          %749 = dma.done %s745, 8192
        $region40: #{tpu_custom_call.1} parent=35 // pred_fallthru
          _
      $region36: #{tpu_custom_call.1} parent=5 // pred_fallthru
        _
    $region6: #{tpu_custom_call.1} parent=1 // loop_footer
      %s17 = sadd.s32 1, %s13
    $region7: #{tpu_custom_call.1} parent=1 // loop_footer_branch
      %12 = sbr.rel target = $region3
    $region8: #{tpu_custom_call.1} parent=1 // loop_exit
      _
    %750 = vsyncpa [#allocation3], 1
    %s751 = scalar_lea.sflag [#allocation3], 1
    %752 = vsyncpa %s751, 1
    %753 = vsyncpa [#allocation4], 1
    %s754 = scalar_lea.sflag [#allocation4], 1
    %755 = vsyncpa %s754, 1

</llo_original>
